<compile_context>
chip_gen: v6e
topology: v6e:2x2x1
jax: 0.10.0
libtpu: 0.0.40
codegen_flags: <defaults>
</compile_context>

<pallas_src>
import functools

import jax
import jax.numpy as jnp
from jax import lax
from jax.experimental import pallas as pl
from jax.experimental.pallas import tpu as pltpu

F_PAD = 128  # lane-dense padded width used for every feature dim and the output


# ----------------------------------------------------------------------------
# Fused kernel: two GraphConv layers + ReLU + ScorePredictor (weight-then-gather)
# ----------------------------------------------------------------------------
def fused_gcn_predictor_kernel(adj1_ref, adj2_ref, x_ref, w1_ref, w2_ref,
                               wps_ref, wpd_ref, bias_ref, ids_ref, out_ref):
    """Whole forward in one kernel; intermediates stay in vregs/VMEM.

        h1  = relu( (A1n @ x ) @ W1 + b1 )          # GraphConv1 (+ outer ReLU)
        h2  = relu(  A2n @ (h1 @ W2) + b2 )         # GraphConv2 (+ outer ReLU)
        pw  = [h2 @ Wp_src ; h2 @ Wp_dst]           # (2N, C) on node rows
        out = onehot_{2N}(src, dst+N) @ pw + bp     # single merged gather matmul

    A*n are the norm-folded weighted adjacencies. All matmuls feed the MXU with
    bf16 operands and f32 accumulation; bias/ReLU epilogues stay in f32.
    """
    f32, bf16 = jnp.float32, jnp.bfloat16
    n = adj1_ref.shape[0]
    ep = out_ref.shape[0]

    # ---- GCN layer 1: aggregate-then-weight (in_feats <= hidden) -----------
    agg1 = jnp.dot(adj1_ref[...], x_ref[...], preferred_element_type=f32)
    h1 = jnp.dot(agg1.astype(bf16), w1_ref[...], preferred_element_type=f32)
    h1 = jnp.maximum(h1 + bias_ref[0:1, :], 0.0).astype(bf16)

    # ---- GCN layer 2: weight-then-aggregate (hidden > out) -----------------
    hw2 = jnp.dot(h1, w2_ref[...], preferred_element_type=f32)
    h2 = jnp.dot(adj2_ref[...], hw2.astype(bf16), preferred_element_type=f32)
    h2 = jnp.maximum(h2 + bias_ref[1:2, :], 0.0).astype(bf16)

    # ---- ScorePredictor: apply Wp on the N node rows FIRST -----------------
    pw_src = jnp.dot(h2, wps_ref[...], preferred_element_type=f32)   # (N, F_PAD)
    pw_dst = jnp.dot(h2, wpd_ref[...], preferred_element_type=f32)   # (N, F_PAD)
    pw_cat = jnp.concatenate([pw_src, pw_dst], axis=0).astype(bf16)  # (2N, F_PAD)

    # ---- merged gather: one one-hot over 2N lanes per edge, single matmul --
    sid = ids_ref[0:ep, :]                                   # (EP, 1) int32
    did = ids_ref[ep:2 * ep, :]                              # (EP, 1) int32
    lane2 = lax.broadcasted_iota(jnp.int32, (ep, 2 * n), 1)
    g_cat = ((sid == lane2) | ((did + n) == lane2)).astype(bf16)     # (EP, 2N)

    out_ref[...] = (jnp.dot(g_cat, pw_cat, preferred_element_type=f32)
                    + bias_ref[2:3, :])                              # lane-dense f32


def fused_forward(adj1n, adj2n, x_pad, w1_pad, w2_pad, wps_pad, wpd_pad,
                  bias_pack, ids):
    n = adj1n.shape[0]
    ep2 = ids.shape[0]
    ep = ep2 // 2

    def full(shape):
        return pl.BlockSpec(shape, lambda i, _nd=len(shape): (0,) * _nd)

    return pl.pallas_call(
        fused_gcn_predictor_kernel,
        out_shape=jax.ShapeDtypeStruct((ep, F_PAD), jnp.float32),
        grid=(1,),
        in_specs=[
            full((n, n)),            # adj1 (norm-folded, bf16)
            full((n, n)),            # adj2
            full((n, F_PAD)),        # x (padded, bf16)
            full((F_PAD, F_PAD)),    # W1
            full((F_PAD, F_PAD)),    # W2
            full((F_PAD, F_PAD)),    # Wp_src
            full((F_PAD, F_PAD)),    # Wp_dst
            full((8, F_PAD)),        # bias pack (b1, b2, bp) f32
            full((ep2, 1)),          # stacked [src; dst] edge ids (int32)
        ],
        out_specs=full((ep, F_PAD)),
        compiler_params=pltpu.CompilerParams(
            dimension_semantics=("arbitrary",),
            vmem_limit_bytes=64 * 1024 * 1024),
    )(adj1n, adj2n, x_pad, w1_pad, w2_pad, wps_pad, wpd_pad, bias_pack, ids)


# ----------------------------------------------------------------------------
# Graph glue: dense normalized adjacency from (src, dst, score).
# Matches DGL GraphConv(norm='both') with edge_weight: unweighted degrees,
# clamp(min=1), norms folded into the adjacency once (outside the hot path).
# ----------------------------------------------------------------------------
def build_block(src, dst, score, n_nodes, dtype=jnp.bfloat16):
    adj = jnp.zeros((n_nodes, n_nodes), jnp.float32).at[dst, src].add(score)
    out_deg = jnp.zeros((n_nodes,), jnp.float32).at[src].add(1.0)
    in_deg = jnp.zeros((n_nodes,), jnp.float32).at[dst].add(1.0)
    norm_out = jnp.maximum(out_deg, 1.0) ** -0.5   # D_out^{-1/2}
    norm_in = jnp.maximum(in_deg, 1.0) ** -0.5     # D_in^{-1/2}
    adj_norm = norm_in[:, None] * adj * norm_out[None, :]
    return adj_norm.astype(dtype)


def pad2(a, rows, cols, dtype):
    out = jnp.zeros((rows, cols), dtype)
    return out.at[:a.shape[0], :a.shape[1]].set(a.astype(dtype))


def prepare_params(params):
    """Pad / pack all model parameters ONCE (hoisted out of the hot path)."""
    hid = params["w1"].shape[1]
    out_f = params["w2"].shape[1]
    num_cls = params["wp"].shape[1]
    bias_pack = jnp.zeros((8, F_PAD), jnp.float32)
    bias_pack = bias_pack.at[0, :hid].set(params["b1"].reshape(-1))
    bias_pack = bias_pack.at[1, :out_f].set(params["b2"].reshape(-1))
    bias_pack = bias_pack.at[2, :num_cls].set(params["bp"].reshape(-1))
    return {
        "w1": pad2(params["w1"], F_PAD, F_PAD, jnp.bfloat16),
        "w2": pad2(params["w2"], F_PAD, F_PAD, jnp.bfloat16),
        "wps": pad2(params["wp"][:out_f], F_PAD, F_PAD, jnp.bfloat16),  # cat-src half
        "wpd": pad2(params["wp"][out_f:], F_PAD, F_PAD, jnp.bfloat16),  # cat-dst half
        "bias": bias_pack,
    }


def prepare_edge_ids(src_p, dst_p):
    """Pack src/dst edge ids into one stacked (2*EP_pad, 1) int32 column.

    EP is padded to a multiple of 8 (unmasked stores on the (EP,128) output).
    Padded rows gather node 0 into rows that are sliced off afterwards — do not
    reduce over the padded output rows.
    """
    ep = src_p.shape[0]
    ep_pad = max(8, ((ep + 7) // 8) * 8)
    ids = jnp.zeros((2 * ep_pad, 1), jnp.int32)
    ids = ids.at[:ep, 0].set(src_p.astype(jnp.int32))
    ids = ids.at[ep_pad:ep_pad + ep, 0].set(dst_p.astype(jnp.int32))
    return ids


@functools.partial(jax.jit, static_argnames=("num_classes", "num_edges"))
def model_forward(prep, blocks, ids, x, *, num_classes, num_edges):
    adj1n, adj2n = blocks
    n, in_f = x.shape
    x_pad = jnp.zeros((n, F_PAD), jnp.bfloat16).at[:, :in_f].set(
        x.astype(jnp.bfloat16))
    out_pad = fused_forward(adj1n, adj2n, x_pad, prep["w1"], prep["w2"],
                            prep["wps"], prep["wpd"], prep["bias"], ids)
    return out_pad[:num_edges, :num_classes]


def xavier_uniform(key, fan_in, fan_out):
    bound = (6.0 / (fan_in + fan_out)) ** 0.5
    return jax.random.uniform(key, (fan_in, fan_out), jnp.float32, -bound, bound)


# TODO(synk): attn=True / augment=True message branches (edge softmax over all
# edges, random augmentation) are not implemented; this covers the
# edge_as_weight=True, attn=False, augment=False configuration.

if __name__ == "__main__":
    # Small shapes consistent with the module
    N = 16            # nodes
    IN_F = 8          # in_features
    HID = 32          # hidden_features
    OUT_F = 16        # out_features
    NUM_CLS = 4       # num_classes
    E1, E2, EP = 48, 48, 24   # edges in blocks[0], blocks[1], edge_subgraph

    key = jax.random.PRNGKey(0)
    ks = jax.random.split(key, 16)

    # Node features
    x = jax.random.normal(ks[0], (N, IN_F), jnp.float32)

    # blocks[0]
    src1 = jax.random.randint(ks[1], (E1,), 0, N)
    dst1 = jax.random.randint(ks[2], (E1,), 0, N)
    score1 = jax.random.uniform(ks[3], (E1,), jnp.float32, 0.1, 1.0)
    adj1n = build_block(src1, dst1, score1, N)

    # blocks[1]
    src2 = jax.random.randint(ks[4], (E2,), 0, N)
    dst2 = jax.random.randint(ks[5], (E2,), 0, N)
    score2 = jax.random.uniform(ks[6], (E2,), jnp.float32, 0.1, 1.0)
    adj2n = build_block(src2, dst2, score2, N)

    # edge_subgraph for the ScorePredictor
    src_p = jax.random.randint(ks[7], (EP,), 0, N)
    dst_p = jax.random.randint(ks[8], (EP,), 0, N)

    # Parameters (matching reset_parameters / nn.Linear shapes)
    bound_p = 1.0 / (2 * OUT_F) ** 0.5
    params = {
        "w1": xavier_uniform(ks[9], IN_F, HID),        # GraphConv1.weight (in, hid)
        "b1": jnp.zeros((HID,), jnp.float32),          # GraphConv1.bias (zeros)
        "w2": xavier_uniform(ks[10], HID, OUT_F),      # GraphConv2.weight (hid, out)
        "b2": jnp.zeros((OUT_F,), jnp.float32),        # GraphConv2.bias (zeros)
        # ScorePredictor.W : Linear(2*out_features, num_classes), stored (2F, C)
        "wp": jax.random.uniform(ks[11], (2 * OUT_F, NUM_CLS), jnp.float32,
                                 -bound_p, bound_p),
        "bp": jax.random.uniform(ks[12], (NUM_CLS,), jnp.float32,
                                 -bound_p, bound_p),
    }

    # Hoisted, once-per-model / once-per-graph preparation.
    prep = jax.tree_util.tree_map(jax.block_until_ready, prepare_params(params))
    ids = jax.block_until_ready(prepare_edge_ids(src_p, dst_p))

    out = model_forward(prep, (adj1n, adj2n), ids, x,
                        num_classes=NUM_CLS, num_edges=EP)
    jax.block_until_ready(out)
    assert out.shape == (EP, NUM_CLS), out.shape
    print("KERNEL_OK")
</pallas_src>

<mosaic_0001>
module attributes {stable_mosaic.version = 11 : i64} {
  func.func @fused_gcn_predictor_kernel(%arg0: i32, %arg1: memref<16x16xbf16, #tpu.memory_space<vmem>>, %arg2: memref<16x16xbf16, #tpu.memory_space<vmem>>, %arg3: memref<16x128xbf16, #tpu.memory_space<vmem>>, %arg4: memref<128x128xbf16, #tpu.memory_space<vmem>>, %arg5: memref<128x128xbf16, #tpu.memory_space<vmem>>, %arg6: memref<128x128xbf16, #tpu.memory_space<vmem>>, %arg7: memref<128x128xbf16, #tpu.memory_space<vmem>>, %arg8: memref<8x128xf32, #tpu.memory_space<vmem>>, %arg9: memref<48x1xi32, #tpu.memory_space<vmem>>, %arg10: memref<24x128xf32, #tpu.memory_space<vmem>>) attributes {dimension_semantics = [#tpu.dimension_semantics<arbitrary>], iteration_bounds = array<i64: 1>, scalar_prefetch = 0 : i64, scratch_operands = 0 : i64, tpu.core_type = #tpu.core_type<tc>, window_params = [{pipeline_mode = #tpu.pipeline_mode<synchronous>, transform_indices = @transform_0, window_bounds = array<i64: 16, 16>}, {pipeline_mode = #tpu.pipeline_mode<synchronous>, transform_indices = @transform_1, window_bounds = array<i64: 16, 16>}, {pipeline_mode = #tpu.pipeline_mode<synchronous>, transform_indices = @transform_2, window_bounds = array<i64: 16, 128>}, {pipeline_mode = #tpu.pipeline_mode<synchronous>, transform_indices = @transform_3, window_bounds = array<i64: 128, 128>}, {pipeline_mode = #tpu.pipeline_mode<synchronous>, transform_indices = @transform_4, window_bounds = array<i64: 128, 128>}, {pipeline_mode = #tpu.pipeline_mode<synchronous>, transform_indices = @transform_5, window_bounds = array<i64: 128, 128>}, {pipeline_mode = #tpu.pipeline_mode<synchronous>, transform_indices = @transform_6, window_bounds = array<i64: 128, 128>}, {pipeline_mode = #tpu.pipeline_mode<synchronous>, transform_indices = @transform_7, window_bounds = array<i64: 8, 128>}, {pipeline_mode = #tpu.pipeline_mode<synchronous>, transform_indices = @transform_8, window_bounds = array<i64: 48, 1>}, {pipeline_mode = #tpu.pipeline_mode<synchronous>, transform_indices = @transform_9, window_bounds = array<i64: 24, 128>}]} {
    %c0 = arith.constant 0 : index
    %c0_0 = arith.constant 0 : index
    %0 = vector.load %arg1[%c0, %c0_0] : memref<16x16xbf16, #tpu.memory_space<vmem>>, vector<16x16xbf16>
    %c0_1 = arith.constant 0 : index
    %c0_2 = arith.constant 0 : index
    %1 = vector.load %arg3[%c0_1, %c0_2] : memref<16x128xbf16, #tpu.memory_space<vmem>>, vector<16x128xbf16>
    %cst = arith.constant dense<0.000000e+00> : vector<16x128xf32>
    %2 = tpu.matmul %0, %1, %cst {dimension_numbers = #tpu.dot_dimension_numbers<[1], [0], [0], [1], [0, 0, 1, 1], [], []>} : vector<16x16xbf16>, vector<16x128xbf16>, vector<16x128xf32> -> vector<16x128xf32>
    %3 = arith.truncf %2 : vector<16x128xf32> to vector<16x128xbf16>
    %c0_3 = arith.constant 0 : index
    %c0_4 = arith.constant 0 : index
    %4 = vector.load %arg4[%c0_3, %c0_4] : memref<128x128xbf16, #tpu.memory_space<vmem>>, vector<128x128xbf16>
    %cst_5 = arith.constant dense<0.000000e+00> : vector<16x128xf32>
    %5 = tpu.matmul %3, %4, %cst_5 {dimension_numbers = #tpu.dot_dimension_numbers<[1], [0], [0], [1], [0, 0, 1, 1], [], []>} : vector<16x128xbf16>, vector<128x128xbf16>, vector<16x128xf32> -> vector<16x128xf32>
    %c0_6 = arith.constant 0 : index
    %c0_7 = arith.constant 0 : index
    %6 = vector.load %arg8[%c0_6, %c0_7] : memref<8x128xf32, #tpu.memory_space<vmem>>, vector<1x128xf32>
    %7 = vector.broadcast %6 : vector<1x128xf32> to vector<16x128xf32>
    %8 = arith.addf %5, %7 : vector<16x128xf32>
    %cst_8 = arith.constant 0.000000e+00 : f32
    %9 = vector.broadcast %cst_8 : f32 to vector<16x128xf32>
    %10 = arith.maximumf %8, %9 : vector<16x128xf32>
    %11 = arith.truncf %10 : vector<16x128xf32> to vector<16x128xbf16>
    %c0_9 = arith.constant 0 : index
    %c0_10 = arith.constant 0 : index
    %12 = vector.load %arg5[%c0_9, %c0_10] : memref<128x128xbf16, #tpu.memory_space<vmem>>, vector<128x128xbf16>
    %cst_11 = arith.constant dense<0.000000e+00> : vector<16x128xf32>
    %13 = tpu.matmul %11, %12, %cst_11 {dimension_numbers = #tpu.dot_dimension_numbers<[1], [0], [0], [1], [0, 0, 1, 1], [], []>} : vector<16x128xbf16>, vector<128x128xbf16>, vector<16x128xf32> -> vector<16x128xf32>
    %c0_12 = arith.constant 0 : index
    %c0_13 = arith.constant 0 : index
    %14 = vector.load %arg2[%c0_12, %c0_13] : memref<16x16xbf16, #tpu.memory_space<vmem>>, vector<16x16xbf16>
    %15 = arith.truncf %13 : vector<16x128xf32> to vector<16x128xbf16>
    %cst_14 = arith.constant dense<0.000000e+00> : vector<16x128xf32>
    %16 = tpu.matmul %14, %15, %cst_14 {dimension_numbers = #tpu.dot_dimension_numbers<[1], [0], [0], [1], [0, 0, 1, 1], [], []>} : vector<16x16xbf16>, vector<16x128xbf16>, vector<16x128xf32> -> vector<16x128xf32>
    %c1 = arith.constant 1 : index
    %c0_15 = arith.constant 0 : index
    %17 = vector.load %arg8[%c1, %c0_15] : memref<8x128xf32, #tpu.memory_space<vmem>>, vector<1x128xf32>
    %18 = vector.broadcast %17 : vector<1x128xf32> to vector<16x128xf32>
    %19 = arith.addf %16, %18 : vector<16x128xf32>
    %cst_16 = arith.constant 0.000000e+00 : f32
    %20 = vector.broadcast %cst_16 : f32 to vector<16x128xf32>
    %21 = arith.maximumf %19, %20 : vector<16x128xf32>
    %22 = arith.truncf %21 : vector<16x128xf32> to vector<16x128xbf16>
    %c0_17 = arith.constant 0 : index
    %c0_18 = arith.constant 0 : index
    %23 = vector.load %arg6[%c0_17, %c0_18] : memref<128x128xbf16, #tpu.memory_space<vmem>>, vector<128x128xbf16>
    %cst_19 = arith.constant dense<0.000000e+00> : vector<16x128xf32>
    %24 = tpu.matmul %22, %23, %cst_19 {dimension_numbers = #tpu.dot_dimension_numbers<[1], [0], [0], [1], [0, 0, 1, 1], [], []>} : vector<16x128xbf16>, vector<128x128xbf16>, vector<16x128xf32> -> vector<16x128xf32>
    %c0_20 = arith.constant 0 : index
    %c0_21 = arith.constant 0 : index
    %25 = vector.load %arg7[%c0_20, %c0_21] : memref<128x128xbf16, #tpu.memory_space<vmem>>, vector<128x128xbf16>
    %cst_22 = arith.constant dense<0.000000e+00> : vector<16x128xf32>
    %26 = tpu.matmul %22, %25, %cst_22 {dimension_numbers = #tpu.dot_dimension_numbers<[1], [0], [0], [1], [0, 0, 1, 1], [], []>} : vector<16x128xbf16>, vector<128x128xbf16>, vector<16x128xf32> -> vector<16x128xf32>
    %27 = tpu.concatenate %24, %26 in 0 : vector<16x128xf32>, vector<16x128xf32> -> vector<32x128xf32>
    %28 = arith.truncf %27 : vector<32x128xf32> to vector<32x128xbf16>
    %c0_23 = arith.constant 0 : index
    %c0_24 = arith.constant 0 : index
    %29 = vector.load %arg9[%c0_23, %c0_24] : memref<48x1xi32, #tpu.memory_space<vmem>>, vector<24x1xi32>
    %c24 = arith.constant 24 : index
    %c0_25 = arith.constant 0 : index
    %30 = vector.load %arg9[%c24, %c0_25] : memref<48x1xi32, #tpu.memory_space<vmem>>, vector<24x1xi32>
    %31 = tpu.iota {dimensions = array<i32: 1>} : vector<24x32xi32>
    %32 = vector.broadcast %29 : vector<24x1xi32> to vector<24x32xi32>
    %33 = arith.cmpi eq, %32, %31 : vector<24x32xi32>
    %c16_i32 = arith.constant 16 : i32
    %34 = vector.broadcast %c16_i32 : i32 to vector<24x1xi32>
    %35 = arith.addi %30, %34 : vector<24x1xi32>
    %36 = vector.broadcast %35 : vector<24x1xi32> to vector<24x32xi32>
    %37 = arith.cmpi eq, %36, %31 : vector<24x32xi32>
    %38 = arith.ori %33, %37 : vector<24x32xi1>
    %39 = arith.extui %38 : vector<24x32xi1> to vector<24x32xi32>
    %40 = arith.sitofp %39 : vector<24x32xi32> to vector<24x32xf32>
    %41 = arith.truncf %40 : vector<24x32xf32> to vector<24x32xbf16>
    %cst_26 = arith.constant dense<0.000000e+00> : vector<24x128xf32>
    %42 = tpu.matmul %41, %28, %cst_26 {dimension_numbers = #tpu.dot_dimension_numbers<[1], [0], [0], [1], [0, 0, 1, 1], [], []>} : vector<24x32xbf16>, vector<32x128xbf16>, vector<24x128xf32> -> vector<24x128xf32>
    %c2 = arith.constant 2 : index
    %c0_27 = arith.constant 0 : index
    %43 = vector.load %arg8[%c2, %c0_27] : memref<8x128xf32, #tpu.memory_space<vmem>>, vector<1x128xf32>
    %44 = vector.broadcast %43 : vector<1x128xf32> to vector<24x128xf32>
    %45 = arith.addf %42, %44 : vector<24x128xf32>
    %c0_28 = arith.constant 0 : index
    %c0_29 = arith.constant 0 : index
    %46 = vector.load %arg10[%c0_28, %c0_29] : memref<24x128xf32, #tpu.memory_space<vmem>>, vector<24x128xf32>
    tpu.vector_store %arg10[%c0_28, %c0_29], %45 {strides = array<i32>} : memref<24x128xf32, #tpu.memory_space<vmem>>, vector<24x128xf32>,
    return
  }
  func.func @transform_0(%arg0: i32) -> (i32, i32) {
    %c0_i32 = arith.constant 0 : i32
    %c0_i32_0 = arith.constant 0 : i32
    %c0_i32_1 = arith.constant 0 : i32
    return %c0_i32, %c0_i32_0 : i32, i32
  }
  func.func @transform_1(%arg0: i32) -> (i32, i32) {
    %c0_i32 = arith.constant 0 : i32
    %c0_i32_0 = arith.constant 0 : i32
    %c0_i32_1 = arith.constant 0 : i32
    return %c0_i32, %c0_i32_0 : i32, i32
  }
  func.func @transform_2(%arg0: i32) -> (i32, i32) {
    %c0_i32 = arith.constant 0 : i32
    %c0_i32_0 = arith.constant 0 : i32
    %c0_i32_1 = arith.constant 0 : i32
    return %c0_i32, %c0_i32_0 : i32, i32
  }
  func.func @transform_3(%arg0: i32) -> (i32, i32) {
    %c0_i32 = arith.constant 0 : i32
    %c0_i32_0 = arith.constant 0 : i32
    %c0_i32_1 = arith.constant 0 : i32
    return %c0_i32, %c0_i32_0 : i32, i32
  }
  func.func @transform_4(%arg0: i32) -> (i32, i32) {
    %c0_i32 = arith.constant 0 : i32
    %c0_i32_0 = arith.constant 0 : i32
    %c0_i32_1 = arith.constant 0 : i32
    return %c0_i32, %c0_i32_0 : i32, i32
  }
  func.func @transform_5(%arg0: i32) -> (i32, i32) {
    %c0_i32 = arith.constant 0 : i32
    %c0_i32_0 = arith.constant 0 : i32
    %c0_i32_1 = arith.constant 0 : i32
    return %c0_i32, %c0_i32_0 : i32, i32
  }
  func.func @transform_6(%arg0: i32) -> (i32, i32) {
    %c0_i32 = arith.constant 0 : i32
    %c0_i32_0 = arith.constant 0 : i32
    %c0_i32_1 = arith.constant 0 : i32
    return %c0_i32, %c0_i32_0 : i32, i32
  }
  func.func @transform_7(%arg0: i32) -> (i32, i32) {
    %c0_i32 = arith.constant 0 : i32
    %c0_i32_0 = arith.constant 0 : i32
    %c0_i32_1 = arith.constant 0 : i32
    return %c0_i32, %c0_i32_0 : i32, i32
  }
  func.func @transform_8(%arg0: i32) -> (i32, i32) {
    %c0_i32 = arith.constant 0 : i32
    %c0_i32_0 = arith.constant 0 : i32
    %c0_i32_1 = arith.constant 0 : i32
    return %c0_i32, %c0_i32_0 : i32, i32
  }
  func.func @transform_9(%arg0: i32) -> (i32, i32) {
    %c0_i32 = arith.constant 0 : i32
    %c0_i32_0 = arith.constant 0 : i32
    %c0_i32_1 = arith.constant 0 : i32
    return %c0_i32, %c0_i32_0 : i32, i32
  }
}

</mosaic_0001>

<llo_original>
// kernel: model_forward.1
$region0: #{model_forward.1}
  #allocation0 [shape = 'u32[]', space=smem, size = 0x4, offset = 0x4, fixed_abs, tag = 'smem constant byte address 0x4 - core index']
  #allocation1 [shape = 'u32[144,128]{1,0:T(1,128)}', space=vmem, size = 0x12000, scoped, tag = 'internal scratch']
  %s0 = inlined_call_operand.vmem [shape: bf16[16,16], index: 0, kind: input, shape index: {}]
  %s1 = inlined_call_operand.vmem [shape: bf16[16,16], index: 1, kind: input, shape index: {}]
  %s2 = inlined_call_operand.vmem [shape: bf16[16,128], index: 2, kind: input, shape index: {}]
  %s3 = inlined_call_operand.vmem [shape: bf16[128,128], index: 3, kind: input, shape index: {}]
  %s4 = inlined_call_operand.hbm [shape: bf16[128,128], index: 4, kind: input, shape index: {}]
  %s5 = inlined_call_operand.hbm [shape: bf16[128,128], index: 5, kind: input, shape index: {}]
  %s6 = inlined_call_operand.hbm [shape: bf16[128,128], index: 6, kind: input, shape index: {}]
  %s7 = inlined_call_operand.vmem [shape: f32[8,128], index: 7, kind: input, shape index: {}]
  %s8 = inlined_call_operand.vmem [shape: s32[48,1], index: 8, kind: input, shape index: {}]
  %s9 = inlined_call_operand.vmem [shape: f32[24,128], index: 9, kind: output, shape index: {}]
  %s10 = sld [smem:[#allocation0]]
  $region58: #{model_forward.1} parent=0
    _
  %s12 = ssub.s32 1, %s10
  %s13 = scalar_select 0, %s12, %s10
  $region1: #{model_forward.1} parent=0
    #allocation2 [shape = 'u8[32768]{0}', space=vmem, size = 0x8000, scoped, tag = 'input window, operand 4, single buffered']
    #allocation3 [shape = 's32[1]{0}', space=sflag, size = 0x4, scoped, tag = 'scoped memory for model_forward.1']
    #allocation4 [shape = 'u8[32768]{0}', space=vmem, size = 0x8000, scoped, tag = 'input window, operand 5, single buffered']
    #allocation5 [shape = 's32[1]{0}', space=sflag, size = 0x4, scoped, tag = 'scoped memory for model_forward.1']
    #allocation6 [shape = 'u8[32768]{0}', space=vmem, size = 0x8000, scoped, tag = 'input window, operand 6, single buffered']
    %14 = vsyncpa [#allocation3], 0
    %15 = vsyncpa [#allocation5], 0
    // Predicated region
    $region2: #{model_forward.1} parent=1 // pred_check
      _
    $region3: #{model_forward.1} parent=1 // pred_check_branch
      %17 = sbr.rel (0) target = $region5
    $region4: #{model_forward.1} parent=1 // pred_region
      _
    $region5: #{model_forward.1} parent=1 // pred_fallthru
      _
    // Predicated region
    $region6: #{model_forward.1} parent=1 // pred_check
      _
    $region7: #{model_forward.1} parent=1 // pred_check_branch
      %19 = sbr.rel (0) target = $region9
    $region8: #{model_forward.1} parent=1 // pred_region
      _
    $region9: #{model_forward.1} parent=1 // pred_fallthru
      _
    // Predicated region
    $region10: #{model_forward.1} parent=1 // pred_check
      _
    $region11: #{model_forward.1} parent=1 // pred_check_branch
      %21 = sbr.rel (0) target = $region13
    $region12: #{model_forward.1} parent=1 // pred_region
      _
    $region13: #{model_forward.1} parent=1 // pred_fallthru
      _
    // Predicated region
    $region14: #{model_forward.1} parent=1 // pred_check
      _
    $region15: #{model_forward.1} parent=1 // pred_check_branch
      %23 = sbr.rel (0) target = $region17
    $region16: #{model_forward.1} parent=1 // pred_region
      _
    $region17: #{model_forward.1} parent=1 // pred_fallthru
      _
    // Predicated region
    $region18: #{model_forward.1} parent=1 // pred_check
      _
    $region19: #{model_forward.1} parent=1 // pred_check_branch
      %25 = sbr.rel (0) target = $region21
    $region20: #{model_forward.1} parent=1 // pred_region
      %s27 = ssub.s32 1024, 1024
      %28 = vsyncadd [#allocation3], %s27
      %s29 = sshll.u32 [#allocation2], 4
      %s30 = int_to_ptr.vmem [resolvable:$true] %s29
      %35 = dma.hbm_to_vmem [thread:$0]  %s4, 1024, %s30, [#allocation3], 64, 64, 4
    $region21: #{model_forward.1} parent=1 // pred_fallthru
      _
    // Predicated region
    $region22: #{model_forward.1} parent=1 // pred_check
      _
    $region23: #{model_forward.1} parent=1 // pred_check_branch
      %37 = sbr.rel (0) target = $region25
    $region24: #{model_forward.1} parent=1 // pred_region
      %s39 = ssub.s32 1024, 1024
      %40 = vsyncadd [#allocation5], %s39
      %s41 = sshll.u32 [#allocation4], 4
      %s42 = int_to_ptr.vmem [resolvable:$true] %s41
      %47 = dma.hbm_to_vmem [thread:$0]  %s5, 1024, %s42, [#allocation5], 64, 64, 4
    $region25: #{model_forward.1} parent=1 // pred_fallthru
      _
    // Predicated region
    $region26: #{model_forward.1} parent=1 // pred_check
      _
    $region27: #{model_forward.1} parent=1 // pred_check_branch
      %49 = sbr.rel (0) target = $region29
    $region28: #{model_forward.1} parent=1 // pred_region
      %s51 = ssub.s32 1024, 1024
      %52 = vsyncadd [#allocation5], %s51
      %s53 = sshll.u32 [#allocation6], 4
      %s54 = int_to_ptr.vmem [resolvable:$true] %s53
      %59 = dma.hbm_to_vmem [thread:$0]  %s6, 1024, %s54, [#allocation5], 64, 64, 4
    $region29: #{model_forward.1} parent=1 // pred_fallthru
      _
    // Predicated region
    $region30: #{model_forward.1} parent=1 // pred_check
      _
    $region31: #{model_forward.1} parent=1 // pred_check_branch
      %61 = sbr.rel (0) target = $region33
    $region32: #{model_forward.1} parent=1 // pred_region
      _
    $region33: #{model_forward.1} parent=1 // pred_fallthru
      _
    // Predicated region
    $region34: #{model_forward.1} parent=1 // pred_check
      _
    $region35: #{model_forward.1} parent=1 // pred_check_branch
      %63 = sbr.rel (0) target = $region37
    $region36: #{model_forward.1} parent=1 // pred_region
      _
    $region37: #{model_forward.1} parent=1 // pred_fallthru
      _
    // Predicated region
    $region38: #{model_forward.1} parent=1 // pred_check
      _
    $region39: #{model_forward.1} parent=1 // pred_check_branch
      %65 = sbr.rel (0) target = $region41
    $region40: #{model_forward.1} parent=1 // pred_region
      %66 = dma.done [#allocation3], 1024
    $region41: #{model_forward.1} parent=1 // pred_fallthru
      _
    // Predicated region
    $region42: #{model_forward.1} parent=1 // pred_check
      _
    $region43: #{model_forward.1} parent=1 // pred_check_branch
      %68 = sbr.rel (0) target = $region45
    $region44: #{model_forward.1} parent=1 // pred_region
      %69 = dma.done [#allocation5], 1024
    $region45: #{model_forward.1} parent=1 // pred_fallthru
      _
    // Predicated region
    $region46: #{model_forward.1} parent=1 // pred_check
      _
    $region47: #{model_forward.1} parent=1 // pred_check_branch
      %71 = sbr.rel (0) target = $region49
    $region48: #{model_forward.1} parent=1 // pred_region
      %72 = dma.done [#allocation5], 1024
    $region49: #{model_forward.1} parent=1 // pred_fallthru
      _
    %v74 = vld [vmem:[%s0] sm:$0xf]
    %v75 = vld [vmem:[%s0 + $0x4] sm:$0xf]
    %v76 = vld [vmem:[%s2] sm:$0xf]
    %v77 = vld [vmem:[%s2 + $0x4] sm:$0xf]
    %v80 = vunpack.c.l.b16 %v74
    %v81 = vunpack.c.l.b16 %v75
    %v82 = vpack.c.b16 %v81, %v80
    %v85 = vunpack.c.l.b16 %v76
    %v86 = vunpack.c.l.b16 %v77
    %v87 = vpack.c.b16 %v86, %v85
    %vm89 = vcmask 130048
    %v91 = vsel %vm89, %v82, 0
    %93 = vmatprep.subr.bf16.mxu0 0
    %94 = vmatpush1.bf16.msra.mxu0 0
    %95 = vmatprep.subr.bf16.mxu0 0
    %96 = vmatpush1.bf16.msra.mxu0 0
    %97 = vmatprep.subr.bf16.mxu0 0
    %98 = vmatpush1.bf16.msra.mxu0 0
    %99 = vmatprep.subr.bf16.mxu0 0
    %100 = vmatpush1.bf16.msra.mxu0 0
    %101 = vmatprep.subr.bf16.mxu0 0
    %102 = vmatpush1.bf16.msra.mxu0 0
    %103 = vmatprep.subr.bf16.mxu0 0
    %104 = vmatpush1.bf16.msra.mxu0 0
    %105 = vmatprep.subr.bf16.mxu0 0
    %106 = vmatpush1.bf16.msra.mxu0 0
    %107 = vmatprep.subr.bf16.mxu0 0
    %108 = vmatpush1.bf16.msra.mxu0 %v87
    %109 = vmatprep.subr.bf16.mxu0 0
    %110 = vmatpush2.bf16.msra.mxu0 0
    %111 = vmatprep.subr.bf16.mxu0 0
    %112 = vmatpush2.bf16.msra.mxu0 0
    %113 = vmatprep.subr.bf16.mxu0 0
    %114 = vmatpush2.bf16.msra.mxu0 0
    %115 = vmatprep.subr.bf16.mxu0 0
    %116 = vmatpush2.bf16.msra.mxu0 0
    %117 = vmatprep.subr.bf16.mxu0 0
    %118 = vmatpush2.bf16.msra.mxu0 0
    %119 = vmatprep.subr.bf16.mxu0 0
    %120 = vmatpush2.bf16.msra.mxu0 0
    %121 = vmatprep.subr.bf16.mxu0 0
    %122 = vmatpush2.bf16.msra.mxu0 0
    %123 = vmatprep.subr.bf16.mxu0 0
    %124 = vmatpush2.bf16.msra.mxu0 0
    %125 = vmatprep.mubr.bf16.mxu0 0
    %126 = vmatmul.mubr.bf16.gmra.mxu0 %v91
    %v127 = vpop.f32.mrf.mxu0
    %v128 = vadd.f32 0.0, %v127
    %v129 = vpop.f32.mrf.mxu0
    %v130 = vpop.f32.mrf.mxu0
    %v131 = vadd.f32 0.0, %v130
    %v132 = vpop.f32.mrf.mxu0
    %133 = vdwg.mxu0
    %v134 = vpack.c.bf16 %v131, %v128
    %v135 = vld [vmem:[%s3] sm:$0xf]
    %v136 = vld [vmem:[%s3 + $0x4] sm:$0xf]
    %v137 = vld [vmem:[%s3 + $0x8] sm:$0xf]
    %v138 = vld [vmem:[%s3 + $0xc] sm:$0xf]
    %v139 = vld [vmem:[%s3 + $0x10] sm:$0xf]
    %v140 = vld [vmem:[%s3 + $0x14] sm:$0xf]
    %v141 = vld [vmem:[%s3 + $0x18] sm:$0xf]
    %v142 = vld [vmem:[%s3 + $0x1c] sm:$0xf]
    %v143 = vld [vmem:[%s3 + $0x20] sm:$0xf]
    %v144 = vld [vmem:[%s3 + $0x24] sm:$0xf]
    %v145 = vld [vmem:[%s3 + $0x28] sm:$0xf]
    %v146 = vld [vmem:[%s3 + $0x2c] sm:$0xf]
    %v147 = vld [vmem:[%s3 + $0x30] sm:$0xf]
    %v148 = vld [vmem:[%s3 + $0x34] sm:$0xf]
    %v149 = vld [vmem:[%s3 + $0x38] sm:$0xf]
    %v150 = vld [vmem:[%s3 + $0x3c] sm:$0xf]
    %v151 = vld [vmem:[%s7] sm:$0x1]
    %v152 = vlaneseq
    %v153 = vshrl.u32 %v152, 7
    %v154 = vsub.s32 0, %v153
    %v155 = vrot.slane %v151, %v154
    %v172 = vunpack.c.l.b16 %v135
    %v173 = vunpack.c.l.b16 %v136
    %v174 = vunpack.c.l.b16 %v137
    %v175 = vunpack.c.l.b16 %v138
    %v176 = vunpack.c.l.b16 %v139
    %v177 = vunpack.c.l.b16 %v140
    %v178 = vunpack.c.l.b16 %v141
    %v179 = vunpack.c.l.b16 %v142
    %v180 = vunpack.c.l.b16 %v143
    %v181 = vunpack.c.l.b16 %v144
    %v182 = vunpack.c.l.b16 %v145
    %v183 = vunpack.c.l.b16 %v146
    %v184 = vunpack.c.l.b16 %v147
    %v185 = vunpack.c.l.b16 %v148
    %v186 = vunpack.c.l.b16 %v149
    %v187 = vunpack.c.l.b16 %v150
    %v188 = vpack.c.b16 %v173, %v172
    %v189 = vpack.c.b16 %v175, %v174
    %v190 = vpack.c.b16 %v177, %v176
    %v191 = vpack.c.b16 %v179, %v178
    %v192 = vpack.c.b16 %v181, %v180
    %v193 = vpack.c.b16 %v183, %v182
    %v194 = vpack.c.b16 %v185, %v184
    %v195 = vpack.c.b16 %v187, %v186
    %204 = vmatprep.subr.bf16.mxu0 0
    %205 = vmatpush1.bf16.msra.mxu0 %v195
    %206 = vmatprep.subr.bf16.mxu0 0
    %207 = vmatpush1.bf16.msra.mxu0 %v194
    %208 = vmatprep.subr.bf16.mxu0 0
    %209 = vmatpush1.bf16.msra.mxu0 %v193
    %210 = vmatprep.subr.bf16.mxu0 0
    %211 = vmatpush1.bf16.msra.mxu0 %v192
    %212 = vmatprep.subr.bf16.mxu0 0
    %213 = vmatpush1.bf16.msra.mxu0 %v191
    %214 = vmatprep.subr.bf16.mxu0 0
    %215 = vmatpush1.bf16.msra.mxu0 %v190
    %216 = vmatprep.subr.bf16.mxu0 0
    %217 = vmatpush1.bf16.msra.mxu0 %v189
    %218 = vmatprep.subr.bf16.mxu0 0
    %219 = vmatpush1.bf16.msra.mxu0 %v188
    %220 = vmatprep.subr.bf16.mxu0 0
    %221 = vmatpush2.bf16.msra.mxu0 0
    %222 = vmatprep.subr.bf16.mxu0 0
    %223 = vmatpush2.bf16.msra.mxu0 0
    %224 = vmatprep.subr.bf16.mxu0 0
    %225 = vmatpush2.bf16.msra.mxu0 0
    %226 = vmatprep.subr.bf16.mxu0 0
    %227 = vmatpush2.bf16.msra.mxu0 0
    %228 = vmatprep.subr.bf16.mxu0 0
    %229 = vmatpush2.bf16.msra.mxu0 0
    %230 = vmatprep.subr.bf16.mxu0 0
    %231 = vmatpush2.bf16.msra.mxu0 0
    %232 = vmatprep.subr.bf16.mxu0 0
    %233 = vmatpush2.bf16.msra.mxu0 0
    %234 = vmatprep.subr.bf16.mxu0 0
    %235 = vmatpush2.bf16.msra.mxu0 0
    %236 = vmatprep.mubr.bf16.mxu0 0
    %237 = vmatmul.mubr.bf16.gmra.mxu0 %v134
    %v238 = vpop.f32.mrf.mxu0
    %v239 = vadd.f32 %v155, %v238
    %v240 = vpop.f32.mrf.mxu0
    %v241 = vpop.f32.mrf.mxu0
    %v242 = vadd.f32 %v155, %v241
    %v243 = vpop.f32.mrf.mxu0
    %244 = vdwg.mxu0
    %v245 = vmax.f32 %v239, 0.0
    %v246 = vmax.f32 %v242, 0.0
    %v247 = vpack.c.bf16 %v246, %v245
    %v248 = vld [vmem:[#allocation2] sm:$0xf]
    %v249 = vld [vmem:[#allocation2 + $0x4] sm:$0xf]
    %v250 = vld [vmem:[#allocation2 + $0x8] sm:$0xf]
    %v251 = vld [vmem:[#allocation2 + $0xc] sm:$0xf]
    %v252 = vld [vmem:[#allocation2 + $0x10] sm:$0xf]
    %v253 = vld [vmem:[#allocation2 + $0x14] sm:$0xf]
    %v254 = vld [vmem:[#allocation2 + $0x18] sm:$0xf]
    %v255 = vld [vmem:[#allocation2 + $0x1c] sm:$0xf]
    %v256 = vld [vmem:[#allocation2 + $0x20] sm:$0xf]
    %v257 = vld [vmem:[#allocation2 + $0x24] sm:$0xf]
    %v258 = vld [vmem:[#allocation2 + $0x28] sm:$0xf]
    %v259 = vld [vmem:[#allocation2 + $0x2c] sm:$0xf]
    %v260 = vld [vmem:[#allocation2 + $0x30] sm:$0xf]
    %v261 = vld [vmem:[#allocation2 + $0x34] sm:$0xf]
    %v262 = vld [vmem:[#allocation2 + $0x38] sm:$0xf]
    %v263 = vld [vmem:[#allocation2 + $0x3c] sm:$0xf]
    %v280 = vunpack.c.l.b16 %v248
    %v281 = vunpack.c.l.b16 %v249
    %v282 = vunpack.c.l.b16 %v250
    %v283 = vunpack.c.l.b16 %v251
    %v284 = vunpack.c.l.b16 %v252
    %v285 = vunpack.c.l.b16 %v253
    %v286 = vunpack.c.l.b16 %v254
    %v287 = vunpack.c.l.b16 %v255
    %v288 = vunpack.c.l.b16 %v256
    %v289 = vunpack.c.l.b16 %v257
    %v290 = vunpack.c.l.b16 %v258
    %v291 = vunpack.c.l.b16 %v259
    %v292 = vunpack.c.l.b16 %v260
    %v293 = vunpack.c.l.b16 %v261
    %v294 = vunpack.c.l.b16 %v262
    %v295 = vunpack.c.l.b16 %v263
    %v296 = vpack.c.b16 %v281, %v280
    %v297 = vpack.c.b16 %v283, %v282
    %v298 = vpack.c.b16 %v285, %v284
    %v299 = vpack.c.b16 %v287, %v286
    %v300 = vpack.c.b16 %v289, %v288
    %v301 = vpack.c.b16 %v291, %v290
    %v302 = vpack.c.b16 %v293, %v292
    %v303 = vpack.c.b16 %v295, %v294
    %312 = vmatprep.subr.bf16.mxu0 0
    %313 = vmatpush1.bf16.msra.mxu0 %v303
    %314 = vmatprep.subr.bf16.mxu0 0
    %315 = vmatpush1.bf16.msra.mxu0 %v302
    %316 = vmatprep.subr.bf16.mxu0 0
    %317 = vmatpush1.bf16.msra.mxu0 %v301
    %318 = vmatprep.subr.bf16.mxu0 0
    %319 = vmatpush1.bf16.msra.mxu0 %v300
    %320 = vmatprep.subr.bf16.mxu0 0
    %321 = vmatpush1.bf16.msra.mxu0 %v299
    %322 = vmatprep.subr.bf16.mxu0 0
    %323 = vmatpush1.bf16.msra.mxu0 %v298
    %324 = vmatprep.subr.bf16.mxu0 0
    %325 = vmatpush1.bf16.msra.mxu0 %v297
    %326 = vmatprep.subr.bf16.mxu0 0
    %327 = vmatpush1.bf16.msra.mxu0 %v296
    %328 = vmatprep.subr.bf16.mxu0 0
    %329 = vmatpush2.bf16.msra.mxu0 0
    %330 = vmatprep.subr.bf16.mxu0 0
    %331 = vmatpush2.bf16.msra.mxu0 0
    %332 = vmatprep.subr.bf16.mxu0 0
    %333 = vmatpush2.bf16.msra.mxu0 0
    %334 = vmatprep.subr.bf16.mxu0 0
    %335 = vmatpush2.bf16.msra.mxu0 0
    %336 = vmatprep.subr.bf16.mxu0 0
    %337 = vmatpush2.bf16.msra.mxu0 0
    %338 = vmatprep.subr.bf16.mxu0 0
    %339 = vmatpush2.bf16.msra.mxu0 0
    %340 = vmatprep.subr.bf16.mxu0 0
    %341 = vmatpush2.bf16.msra.mxu0 0
    %342 = vmatprep.subr.bf16.mxu0 0
    %343 = vmatpush2.bf16.msra.mxu0 0
    %344 = vmatprep.mubr.bf16.mxu0 0
    %345 = vmatmul.mubr.bf16.gmra.mxu0 %v247
    %v346 = vpop.f32.mrf.mxu0
    %v347 = vadd.f32 0.0, %v346
    %v348 = vpop.f32.mrf.mxu0
    %v349 = vpop.f32.mrf.mxu0
    %v350 = vadd.f32 0.0, %v349
    %v351 = vpop.f32.mrf.mxu0
    %352 = vdwg.mxu0
    %v353 = vld [vmem:[%s1] sm:$0xf]
    %v354 = vld [vmem:[%s1 + $0x4] sm:$0xf]
    %v355 = vpack.c.bf16 %v350, %v347
    %v356 = vld [vmem:[%s7 + $0x1] sm:$0x1]
    %v357 = vlaneseq
    %v358 = vshrl.u32 %v357, 7
    %v359 = vsub.s32 0, %v358
    %v360 = vrot.slane %v356, %v359
    %v363 = vunpack.c.l.b16 %v353
    %v364 = vunpack.c.l.b16 %v354
    %v365 = vpack.c.b16 %v364, %v363
    %v367 = vsel %vm89, %v365, 0
    %369 = vmatprep.subr.bf16.mxu0 0
    %370 = vmatpush1.bf16.msra.mxu0 0
    %371 = vmatprep.subr.bf16.mxu0 0
    %372 = vmatpush1.bf16.msra.mxu0 0
    %373 = vmatprep.subr.bf16.mxu0 0
    %374 = vmatpush1.bf16.msra.mxu0 0
    %375 = vmatprep.subr.bf16.mxu0 0
    %376 = vmatpush1.bf16.msra.mxu0 0
    %377 = vmatprep.subr.bf16.mxu0 0
    %378 = vmatpush1.bf16.msra.mxu0 0
    %379 = vmatprep.subr.bf16.mxu0 0
    %380 = vmatpush1.bf16.msra.mxu0 0
    %381 = vmatprep.subr.bf16.mxu0 0
    %382 = vmatpush1.bf16.msra.mxu0 0
    %383 = vmatprep.subr.bf16.mxu0 0
    %384 = vmatpush1.bf16.msra.mxu0 %v355
    %385 = vmatprep.subr.bf16.mxu0 0
    %386 = vmatpush2.bf16.msra.mxu0 0
    %387 = vmatprep.subr.bf16.mxu0 0
    %388 = vmatpush2.bf16.msra.mxu0 0
    %389 = vmatprep.subr.bf16.mxu0 0
    %390 = vmatpush2.bf16.msra.mxu0 0
    %391 = vmatprep.subr.bf16.mxu0 0
    %392 = vmatpush2.bf16.msra.mxu0 0
    %393 = vmatprep.subr.bf16.mxu0 0
    %394 = vmatpush2.bf16.msra.mxu0 0
    %395 = vmatprep.subr.bf16.mxu0 0
    %396 = vmatpush2.bf16.msra.mxu0 0
    %397 = vmatprep.subr.bf16.mxu0 0
    %398 = vmatpush2.bf16.msra.mxu0 0
    %399 = vmatprep.subr.bf16.mxu0 0
    %400 = vmatpush2.bf16.msra.mxu0 0
    %401 = vmatprep.mubr.bf16.mxu0 0
    %402 = vmatmul.mubr.bf16.gmra.mxu0 %v367
    %v403 = vpop.f32.mrf.mxu0
    %v404 = vadd.f32 %v360, %v403
    %v405 = vpop.f32.mrf.mxu0
    %v406 = vpop.f32.mrf.mxu0
    %v407 = vadd.f32 %v360, %v406
    %v408 = vpop.f32.mrf.mxu0
    %409 = vdwg.mxu0
    %v410 = vmax.f32 %v404, 0.0
    %v411 = vmax.f32 %v407, 0.0
    %v412 = vpack.c.bf16 %v411, %v410
    %v413 = vld [vmem:[#allocation4] sm:$0xf]
    %v414 = vld [vmem:[#allocation4 + $0x4] sm:$0xf]
    %v415 = vld [vmem:[#allocation4 + $0x8] sm:$0xf]
    %v416 = vld [vmem:[#allocation4 + $0xc] sm:$0xf]
    %v417 = vld [vmem:[#allocation4 + $0x10] sm:$0xf]
    %v418 = vld [vmem:[#allocation4 + $0x14] sm:$0xf]
    %v419 = vld [vmem:[#allocation4 + $0x18] sm:$0xf]
    %v420 = vld [vmem:[#allocation4 + $0x1c] sm:$0xf]
    %v421 = vld [vmem:[#allocation4 + $0x20] sm:$0xf]
    %v422 = vld [vmem:[#allocation4 + $0x24] sm:$0xf]
    %v423 = vld [vmem:[#allocation4 + $0x28] sm:$0xf]
    %v424 = vld [vmem:[#allocation4 + $0x2c] sm:$0xf]
    %v425 = vld [vmem:[#allocation4 + $0x30] sm:$0xf]
    %v426 = vld [vmem:[#allocation4 + $0x34] sm:$0xf]
    %v427 = vld [vmem:[#allocation4 + $0x38] sm:$0xf]
    %v428 = vld [vmem:[#allocation4 + $0x3c] sm:$0xf]
    %v445 = vunpack.c.l.b16 %v413
    %v446 = vunpack.c.l.b16 %v414
    %v447 = vunpack.c.l.b16 %v415
    %v448 = vunpack.c.l.b16 %v416
    %v449 = vunpack.c.l.b16 %v417
    %v450 = vunpack.c.l.b16 %v418
    %v451 = vunpack.c.l.b16 %v419
    %v452 = vunpack.c.l.b16 %v420
    %v453 = vunpack.c.l.b16 %v421
    %v454 = vunpack.c.l.b16 %v422
    %v455 = vunpack.c.l.b16 %v423
    %v456 = vunpack.c.l.b16 %v424
    %v457 = vunpack.c.l.b16 %v425
    %v458 = vunpack.c.l.b16 %v426
    %v459 = vunpack.c.l.b16 %v427
    %v460 = vunpack.c.l.b16 %v428
    %v461 = vpack.c.b16 %v446, %v445
    %v462 = vpack.c.b16 %v448, %v447
    %v463 = vpack.c.b16 %v450, %v449
    %v464 = vpack.c.b16 %v452, %v451
    %v465 = vpack.c.b16 %v454, %v453
    %v466 = vpack.c.b16 %v456, %v455
    %v467 = vpack.c.b16 %v458, %v457
    %v468 = vpack.c.b16 %v460, %v459
    %477 = vmatprep.subr.bf16.mxu0 0
    %478 = vmatpush1.bf16.msra.mxu0 %v468
    %479 = vmatprep.subr.bf16.mxu0 0
    %480 = vmatpush1.bf16.msra.mxu0 %v467
    %481 = vmatprep.subr.bf16.mxu0 0
    %482 = vmatpush1.bf16.msra.mxu0 %v466
    %483 = vmatprep.subr.bf16.mxu0 0
    %484 = vmatpush1.bf16.msra.mxu0 %v465
    %485 = vmatprep.subr.bf16.mxu0 0
    %486 = vmatpush1.bf16.msra.mxu0 %v464
    %487 = vmatprep.subr.bf16.mxu0 0
    %488 = vmatpush1.bf16.msra.mxu0 %v463
    %489 = vmatprep.subr.bf16.mxu0 0
    %490 = vmatpush1.bf16.msra.mxu0 %v462
    %491 = vmatprep.subr.bf16.mxu0 0
    %492 = vmatpush1.bf16.msra.mxu0 %v461
    %493 = vmatprep.subr.bf16.mxu0 0
    %494 = vmatpush2.bf16.msra.mxu0 0
    %495 = vmatprep.subr.bf16.mxu0 0
    %496 = vmatpush2.bf16.msra.mxu0 0
    %497 = vmatprep.subr.bf16.mxu0 0
    %498 = vmatpush2.bf16.msra.mxu0 0
    %499 = vmatprep.subr.bf16.mxu0 0
    %500 = vmatpush2.bf16.msra.mxu0 0
    %501 = vmatprep.subr.bf16.mxu0 0
    %502 = vmatpush2.bf16.msra.mxu0 0
    %503 = vmatprep.subr.bf16.mxu0 0
    %504 = vmatpush2.bf16.msra.mxu0 0
    %505 = vmatprep.subr.bf16.mxu0 0
    %506 = vmatpush2.bf16.msra.mxu0 0
    %507 = vmatprep.subr.bf16.mxu0 0
    %508 = vmatpush2.bf16.msra.mxu0 0
    %509 = vmatprep.mubr.bf16.mxu0 0
    %510 = vmatmul.mubr.bf16.gmra.mxu0 %v412
    %v511 = vpop.f32.mrf.mxu0
    %v512 = vadd.f32 0.0, %v511
    %v513 = vpop.f32.mrf.mxu0
    %v514 = vpop.f32.mrf.mxu0
    %v515 = vadd.f32 0.0, %v514
    %v516 = vpop.f32.mrf.mxu0
    %517 = vdwg.mxu0
    %v518 = vld [vmem:[#allocation6] sm:$0xf]
    %v519 = vld [vmem:[#allocation6 + $0x4] sm:$0xf]
    %v520 = vld [vmem:[#allocation6 + $0x8] sm:$0xf]
    %v521 = vld [vmem:[#allocation6 + $0xc] sm:$0xf]
    %v522 = vld [vmem:[#allocation6 + $0x10] sm:$0xf]
    %v523 = vld [vmem:[#allocation6 + $0x14] sm:$0xf]
    %v524 = vld [vmem:[#allocation6 + $0x18] sm:$0xf]
    %v525 = vld [vmem:[#allocation6 + $0x1c] sm:$0xf]
    %v526 = vld [vmem:[#allocation6 + $0x20] sm:$0xf]
    %v527 = vld [vmem:[#allocation6 + $0x24] sm:$0xf]
    %v528 = vld [vmem:[#allocation6 + $0x28] sm:$0xf]
    %v529 = vld [vmem:[#allocation6 + $0x2c] sm:$0xf]
    %v530 = vld [vmem:[#allocation6 + $0x30] sm:$0xf]
    %v531 = vld [vmem:[#allocation6 + $0x34] sm:$0xf]
    %v532 = vld [vmem:[#allocation6 + $0x38] sm:$0xf]
    %v533 = vld [vmem:[#allocation6 + $0x3c] sm:$0xf]
    %v550 = vunpack.c.l.b16 %v518
    %v551 = vunpack.c.l.b16 %v519
    %v552 = vunpack.c.l.b16 %v520
    %v553 = vunpack.c.l.b16 %v521
    %v554 = vunpack.c.l.b16 %v522
    %v555 = vunpack.c.l.b16 %v523
    %v556 = vunpack.c.l.b16 %v524
    %v557 = vunpack.c.l.b16 %v525
    %v558 = vunpack.c.l.b16 %v526
    %v559 = vunpack.c.l.b16 %v527
    %v560 = vunpack.c.l.b16 %v528
    %v561 = vunpack.c.l.b16 %v529
    %v562 = vunpack.c.l.b16 %v530
    %v563 = vunpack.c.l.b16 %v531
    %v564 = vunpack.c.l.b16 %v532
    %v565 = vunpack.c.l.b16 %v533
    %v566 = vpack.c.b16 %v551, %v550
    %v567 = vpack.c.b16 %v553, %v552
    %v568 = vpack.c.b16 %v555, %v554
    %v569 = vpack.c.b16 %v557, %v556
    %v570 = vpack.c.b16 %v559, %v558
    %v571 = vpack.c.b16 %v561, %v560
    %v572 = vpack.c.b16 %v563, %v562
    %v573 = vpack.c.b16 %v565, %v564
    %582 = vmatprep.subr.bf16.mxu0 0
    %583 = vmatpush1.bf16.msra.mxu0 %v573
    %584 = vmatprep.subr.bf16.mxu0 0
    %585 = vmatpush1.bf16.msra.mxu0 %v572
    %586 = vmatprep.subr.bf16.mxu0 0
    %587 = vmatpush1.bf16.msra.mxu0 %v571
    %588 = vmatprep.subr.bf16.mxu0 0
    %589 = vmatpush1.bf16.msra.mxu0 %v570
    %590 = vmatprep.subr.bf16.mxu0 0
    %591 = vmatpush1.bf16.msra.mxu0 %v569
    %592 = vmatprep.subr.bf16.mxu0 0
    %593 = vmatpush1.bf16.msra.mxu0 %v568
    %594 = vmatprep.subr.bf16.mxu0 0
    %595 = vmatpush1.bf16.msra.mxu0 %v567
    %596 = vmatprep.subr.bf16.mxu0 0
    %597 = vmatpush1.bf16.msra.mxu0 %v566
    %598 = vmatprep.subr.bf16.mxu0 0
    %599 = vmatpush2.bf16.msra.mxu0 0
    %600 = vmatprep.subr.bf16.mxu0 0
    %601 = vmatpush2.bf16.msra.mxu0 0
    %602 = vmatprep.subr.bf16.mxu0 0
    %603 = vmatpush2.bf16.msra.mxu0 0
    %604 = vmatprep.subr.bf16.mxu0 0
    %605 = vmatpush2.bf16.msra.mxu0 0
    %606 = vmatprep.subr.bf16.mxu0 0
    %607 = vmatpush2.bf16.msra.mxu0 0
    %608 = vmatprep.subr.bf16.mxu0 0
    %609 = vmatpush2.bf16.msra.mxu0 0
    %610 = vmatprep.subr.bf16.mxu0 0
    %611 = vmatpush2.bf16.msra.mxu0 0
    %612 = vmatprep.subr.bf16.mxu0 0
    %613 = vmatpush2.bf16.msra.mxu0 0
    %614 = vmatprep.mubr.bf16.mxu0 0
    %615 = vmatmul.mubr.bf16.gmra.mxu0 %v412
    %v616 = vpop.f32.mrf.mxu0
    %v617 = vadd.f32 0.0, %v616
    %v618 = vpop.f32.mrf.mxu0
    %v619 = vpop.f32.mrf.mxu0
    %v620 = vadd.f32 0.0, %v619
    %v621 = vpop.f32.mrf.mxu0
    %622 = vdwg.mxu0
    %v623 = vpack.c.bf16 %v515, %v512
    %v624 = vpack.c.bf16 %v620, %v617
    %v625 = vld [vmem:[%s8] sm:$0xff]
    %v626 = vld [vmem:[%s8 + $0x8] sm:$0xff]
    %v627 = vld [vmem:[%s8 + $0x10] sm:$0xff]
    %v628 = vld [vmem:[%s8 + $0x18] sm:$0xff]
    %v629 = vld [vmem:[%s8 + $0x20] sm:$0xff]
    %v630 = vld [vmem:[%s8 + $0x28] sm:$0xff]
    %v631 = vlaneseq
    %v632 = vand.u32 %v631, 127
    %633 = vset.pattern.permute.xlu0 0
    %634 = vperm.xlu0 %633, %v625
    %v635 = vpop.permute.xlu0 %634
    %636 = vset.pattern.permute.xlu0 0
    %637 = vperm.xlu0 %636, %v626
    %v638 = vpop.permute.xlu0 %637
    %639 = vset.pattern.permute.xlu0 0
    %640 = vperm.xlu0 %639, %v627
    %v641 = vpop.permute.xlu0 %640
    %vm642 = vcmp.eq.s32.totalorder %v635, %v632
    %vm643 = vcmp.eq.s32.totalorder %v638, %v632
    %vm644 = vcmp.eq.s32.totalorder %v641, %v632
    %v645 = vadd.s32 %v628, 16
    %v646 = vadd.s32 %v629, 16
    %v647 = vadd.s32 %v630, 16
    %648 = vset.pattern.permute.xlu0 0
    %649 = vperm.xlu0 %648, %v645
    %v650 = vpop.permute.xlu0 %649
    %651 = vset.pattern.permute.xlu0 0
    %652 = vperm.xlu0 %651, %v646
    %v653 = vpop.permute.xlu0 %652
    %654 = vset.pattern.permute.xlu0 0
    %655 = vperm.xlu0 %654, %v647
    %v656 = vpop.permute.xlu0 %655
    %vm657 = vcmp.eq.s32.totalorder %v650, %v632
    %vm658 = vcmp.eq.s32.totalorder %v653, %v632
    %vm659 = vcmp.eq.s32.totalorder %v656, %v632
    %vm660 = vmor %vm642, %vm657
    %vm661 = vmor %vm643, %vm658
    %vm662 = vmor %vm644, %vm659
    %v663 = vsel %vm660, 1, 0
    %v664 = vsel %vm661, 1, 0
    %v665 = vsel %vm662, 1, 0
    %v666 = vcvt.s32.f32 %v663
    %v667 = vcvt.s32.f32 %v664
    %v668 = vcvt.s32.f32 %v665
    %v669 = vpack.c.bf16 %v667, %v666
    %v670 = vpack.c.bf16 %v668, %v668
    %v671 = vld [vmem:[%s7 + $0x2] sm:$0x1]
    %v672 = vlaneseq
    %v673 = vshrl.u32 %v672, 7
    %v674 = vsub.s32 0, %v673
    %v675 = vrot.slane %v671, %v674
    %vm676 = vcmask 261120
    %v678 = vsel %vm676, %v669, 0
    %v681 = vsel %vm676, %v670, 0
    %683 = vmatprep.subr.bf16.mxu0 0
    %684 = vmatpush1.bf16.msra.mxu0 0
    %685 = vmatprep.subr.bf16.mxu0 0
    %686 = vmatpush1.bf16.msra.mxu0 0
    %687 = vmatprep.subr.bf16.mxu0 0
    %688 = vmatpush1.bf16.msra.mxu0 0
    %689 = vmatprep.subr.bf16.mxu0 0
    %690 = vmatpush1.bf16.msra.mxu0 0
    %691 = vmatprep.subr.bf16.mxu0 0
    %692 = vmatpush1.bf16.msra.mxu0 0
    %693 = vmatprep.subr.bf16.mxu0 0
    %694 = vmatpush1.bf16.msra.mxu0 0
    %695 = vmatprep.subr.bf16.mxu0 0
    %696 = vmatpush1.bf16.msra.mxu0 %v624
    %697 = vmatprep.subr.bf16.mxu0 0
    %698 = vmatpush1.bf16.msra.mxu0 %v623
    %699 = vmatprep.subr.bf16.mxu0 0
    %700 = vmatpush2.bf16.msra.mxu0 0
    %701 = vmatprep.subr.bf16.mxu0 0
    %702 = vmatpush2.bf16.msra.mxu0 0
    %703 = vmatprep.subr.bf16.mxu0 0
    %704 = vmatpush2.bf16.msra.mxu0 0
    %705 = vmatprep.subr.bf16.mxu0 0
    %706 = vmatpush2.bf16.msra.mxu0 0
    %707 = vmatprep.subr.bf16.mxu0 0
    %708 = vmatpush2.bf16.msra.mxu0 0
    %709 = vmatprep.subr.bf16.mxu0 0
    %710 = vmatpush2.bf16.msra.mxu0 0
    %711 = vmatprep.subr.bf16.mxu0 0
    %712 = vmatpush2.bf16.msra.mxu0 0
    %713 = vmatprep.subr.bf16.mxu0 0
    %714 = vmatpush2.bf16.msra.mxu0 0
    %715 = vmatprep.mubr.bf16.mxu0 0
    %716 = vmatmul.mubr.bf16.gmra.mxu0 %v678
    %v717 = vpop.f32.mrf.mxu0
    %v718 = vadd.f32 %v675, %v717
    %v719 = vpop.f32.mrf.mxu0
    %v720 = vpop.f32.mrf.mxu0
    %v721 = vadd.f32 %v675, %v720
    %v722 = vpop.f32.mrf.mxu0
    %723 = vmatprep.mubr.bf16.mxu0 0
    %724 = vmatmul.mubr.bf16.gmra.mxu0 %v681
    %v725 = vpop.f32.mrf.mxu0
    %v726 = vadd.f32 %v675, %v725
    %v727 = vpop.f32.mrf.mxu0
    %v728 = vpop.f32.mrf.mxu0
    %v729 = vpop.f32.mrf.mxu0
    %730 = vdwg.mxu0
    %731 = vst [vmem:[%s9] sm:$0xff] %v718
    %732 = vst [vmem:[%s9 + $0x8] sm:$0xff] %v721
    %733 = vst [vmem:[%s9 + $0x10] sm:$0xff] %v726
    // Predicated region
    $region50: #{model_forward.1} parent=1 // pred_check
      _
    $region51: #{model_forward.1} parent=1 // pred_check_branch
      %735 = sbr.rel (0) target = $region53
    $region52: #{model_forward.1} parent=1 // pred_region
      _
    $region53: #{model_forward.1} parent=1 // pred_fallthru
      _
    // Predicated region
    $region54: #{model_forward.1} parent=1 // pred_check
      _
    $region55: #{model_forward.1} parent=1 // pred_check_branch
      %737 = sbr.rel (0) target = $region57
    $region56: #{model_forward.1} parent=1 // pred_region
      _
    $region57: #{model_forward.1} parent=1 // pred_fallthru
      _
    %738 = vsyncpa [#allocation3], 1
    %739 = vsyncpa [#allocation5], 1

</llo_original>
